<compile_context>
chip_gen: v7x
topology: tpu7x:2x2x1
jax: 0.10.0
libtpu: 0.0.40
codegen_flags: <defaults>
</compile_context>

<pallas_src>
import numpy as np
import jax
import jax.numpy as jnp
from jax.experimental import pallas as pl
from jax.experimental.pallas import tpu as pltpu

# ---------------- config (small shapes consistent with the module) ----------------
BATCH = 2
SEQ = 8
HIDDEN = 32
EPS = 1e-6


# ---------------- Pallas kernel ----------------
def _make_rmsnorm_kernel(eps, fuse_gamma):
    def kernel(x_ref, gamma_ref, o_ref):
        # x_ref block: (rows_tile, H) in VMEM.  gamma_ref: (1,) scalar in SMEM.
        x = x_ref[...]
        xf = x.astype(jnp.float32)                          # x.float()
        ms = jnp.mean(xf * xf, axis=-1, keepdims=True)      # mean(x^2) over hidden
        inv = jax.lax.rsqrt(ms + eps)                       # rsqrt on the EUP slot
        g = gamma_ref[0]
        if fuse_gamma:
            # Bit-exact with the spec when x is f32 (the .type_as(x) cast is a
            # no-op); saves one full-tile VPU multiply + cast pass.
            o_ref[...] = (xf * (inv * g)).astype(o_ref.dtype)
        else:
            # Spec-faithful order for non-f32 inputs: cast to x.dtype, then * gamma.
            y = (xf * inv).astype(x.dtype)                   # .type_as(x)
            o_ref[...] = (y * g).astype(o_ref.dtype)
    return kernel


def rmsnorm_pallas(x, gamma, eps=EPS):
    """x: (..., H); gamma: (1,) scalar parameter (PyTorch nn.Parameter(torch.ones(1)))."""
    orig_shape = x.shape
    H = orig_shape[-1]
    rows = int(np.prod(orig_shape[:-1]))
    x2 = x.reshape(rows, H)

    out_dtype = jnp.promote_types(x.dtype, gamma.dtype)  # matches PyTorch promotion of out * gamma
    fuse_gamma = (x.dtype == jnp.float32) and (gamma.dtype == jnp.float32)

    # Row-tile sizing: keep one f32 tile around <= 4 MiB so double-buffered
    # in + out tiles stay within the default scoped-VMEM budget on v5e/v6e/v7x.
    bytes_per_row_f32 = H * 4
    rows_tile_cap = max(8, min(1024, ((4 << 20) // bytes_per_row_f32) // 8 * 8))

    if rows <= rows_tile_cap:
        # Small problem: single grid step, block == full array (satisfies the
        # (8,128)-or-full-dim rule regardless of H / row count).
        rows_tile = rows
        rows_padded = rows
    else:
        rows_tile = rows_tile_cap                       # multiple of 8 sublanes
        rows_padded = int(pl.cdiv(rows, rows_tile)) * rows_tile
        if rows_padded != rows:
            x2 = jnp.pad(x2, ((0, rows_padded - rows), (0, 0)))

    grid = (rows_padded // rows_tile,)

    grid_spec = pltpu.PrefetchScalarGridSpec(
        num_scalar_prefetch=0,
        grid=grid,
        in_specs=[
            pl.BlockSpec((rows_tile, H), lambda i: (i, 0)),          # row tile of x
            pl.BlockSpec(memory_space=pltpu.MemorySpace.SMEM),       # scalar gamma in SMEM
        ],
        out_specs=pl.BlockSpec((rows_tile, H), lambda i: (i, 0)),
    )

    out = pl.pallas_call(
        _make_rmsnorm_kernel(eps, fuse_gamma),
        out_shape=jax.ShapeDtypeStruct((rows_padded, H), out_dtype),
        grid_spec=grid_spec,
        compiler_params=pltpu.CompilerParams(
            dimension_semantics=("parallel",),  # independent row tiles
        ),
    )(x2, gamma)

    if rows_padded != rows:
        out = out[:rows]
    return out.reshape(orig_shape)


# ---------------- pure-JAX reference (mirrors the PyTorch forward) ----------------
def rmsnorm_ref(x, gamma, eps=EPS):
    xf = x.astype(jnp.float32)
    inv = jax.lax.rsqrt(jnp.mean(xf * xf, axis=-1, keepdims=True) + eps)
    y = (xf * inv).astype(x.dtype)          # .type_as(x)
    return y * gamma[0]                     # * self.gamma (scalar)


# ---------------- main ----------------
if __name__ == "__main__":
    key = jax.random.PRNGKey(0)
    x = jax.random.normal(key, (BATCH, SEQ, HIDDEN), dtype=jnp.float32)
    # Module initializes gamma to ones; use a non-trivial deterministic value so the
    # gamma-multiply path is actually exercised by the check.
    gamma = jnp.array([1.2345], dtype=jnp.float32)

    out = rmsnorm_pallas(x, gamma)
    out = jax.block_until_ready(out)

    ref = rmsnorm_ref(x, gamma)
    np.testing.assert_allclose(np.asarray(out), np.asarray(ref), rtol=1e-5, atol=1e-5)

    print("KERNEL_OK")
</pallas_src>

<mosaic_0001>
module attributes {stable_mosaic.version = 11 : i64} {
  func.func @kernel(%arg0: i32, %arg1: memref<16x32xf32, #tpu.memory_space<vmem>>, %arg2: memref<1xf32, #tpu.memory_space<smem>>, %arg3: memref<16x32xf32, #tpu.memory_space<vmem>>) attributes {dimension_semantics = [#tpu.dimension_semantics<parallel>], iteration_bounds = array<i64: 1>, scalar_prefetch = 0 : i64, scratch_operands = 0 : i64, tpu.core_type = #tpu.core_type<tc>, window_params = [{transform_indices = @transform_0, window_bounds = array<i64: 16, 32>}, {transform_indices = @transform_1, window_bounds = array<i64: 1>}, {transform_indices = @transform_2, window_bounds = array<i64: 16, 32>}]} {
    %c0 = arith.constant 0 : index
    %c0_0 = arith.constant 0 : index
    %0 = vector.load %arg1[%c0, %c0_0] : memref<16x32xf32, #tpu.memory_space<vmem>>, vector<16x32xf32>
    %1 = arith.mulf %0, %0 : vector<16x32xf32>
    %cst = arith.constant dense<0.000000e+00> : vector<16xf32>
    %2 = vector.multi_reduction <add>, %1, %cst [1] : vector<16x32xf32> to vector<16xf32>
    %3 = vector.shape_cast %2 : vector<16xf32> to vector<16x1xf32>
    %cst_1 = arith.constant 3.200000e+01 : f32
    %4 = vector.broadcast %cst_1 : f32 to vector<16x1xf32>
    %5 = arith.divf %3, %4 : vector<16x1xf32>
    %cst_2 = arith.constant 9.99999997E-7 : f32
    %6 = vector.broadcast %cst_2 : f32 to vector<16x1xf32>
    %7 = arith.addf %5, %6 : vector<16x1xf32>
    %8 = math.rsqrt %7 : vector<16x1xf32>
    %c0_3 = arith.constant 0 : index
    %9 = memref.load %arg2[%c0_3] : memref<1xf32, #tpu.memory_space<smem>>
    %10 = vector.broadcast %9 : f32 to vector<16x1xf32>
    %11 = arith.mulf %8, %10 : vector<16x1xf32>
    %12 = vector.broadcast %11 : vector<16x1xf32> to vector<16x32xf32>
    %13 = arith.mulf %0, %12 : vector<16x32xf32>
    %c0_4 = arith.constant 0 : index
    %c0_5 = arith.constant 0 : index
    %14 = vector.load %arg3[%c0_4, %c0_5] : memref<16x32xf32, #tpu.memory_space<vmem>>, vector<16x32xf32>
    tpu.vector_store %arg3[%c0_4, %c0_5], %13 {strides = array<i32>} : memref<16x32xf32, #tpu.memory_space<vmem>>, vector<16x32xf32>,
    return
  }
  func.func @transform_0(%arg0: i32) -> (i32, i32) {
    %c0_i32 = arith.constant 0 : i32
    %c0_i32_0 = arith.constant 0 : i32
    return %arg0, %c0_i32 : i32, i32
  }
  func.func @transform_1(%arg0: i32) -> i32 {
    %c0_i32 = arith.constant 0 : i32
    %c0_i32_0 = arith.constant 0 : i32
    return %c0_i32 : i32
  }
  func.func @transform_2(%arg0: i32) -> (i32, i32) {
    %c0_i32 = arith.constant 0 : i32
    %c0_i32_0 = arith.constant 0 : i32
    return %arg0, %c0_i32 : i32, i32
  }
}

</mosaic_0001>

<llo_original>
// kernel: tpu_custom_call.1
$region0: #{tpu_custom_call.1}
  #allocation0 [shape = 'u32[]', space=smem, size = 0x4, offset = 0x4, fixed_abs, tag = 'smem constant byte address 0x4 - core index']
  #allocation1 [shape = 'u32[144,128]{1,0:T(1,128)}', space=vmem, size = 0x12000, scoped, tag = 'internal scratch']
  #allocation2 [shape = 'f32[1]{0:T(128)S(6)}', space=smem, size = 0x200, scoped, tag = 'scoped memory for tpu_custom_call.1']
  %s0 = inlined_call_operand.hbm [shape: f32[16,32], index: 0, kind: input, shape index: {}]
  %s1 = inlined_call_operand.<no memory space> [shape: f32[1], index: 1, kind: input, shape index: {}]
  %s2 = inlined_call_operand.hbm [shape: f32[16,32], index: 2, kind: output, shape index: {}]
  %s3 = sld [smem:[#allocation0]]
  $region22: #{tpu_custom_call.1} parent=0
    _
  %s5 = ssub.s32 1, %s3
  %s6 = scalar_select 0, %s5, %s3
  %7 = sst [smem:[#allocation2]] %s1
  $region1: #{tpu_custom_call.1} parent=0
    #allocation3 [shape = 'u8[8192]{0}', space=vmem, size = 0x2000, scoped, tag = 'input window, operand 0, single buffered']
    #allocation4 [shape = 's32[1]{0}', space=sflag, size = 0x4, scoped, tag = 'scoped memory for tpu_custom_call.1']
    #allocation5 [shape = 's32[1]{0}', space=sflag, size = 0x4, scoped, tag = 'scoped memory for tpu_custom_call.1']
    #allocation6 [shape = 'u8[8192]{0}', space=vmem, size = 0x2000, scoped, tag = 'output window, operand 0, single buffered']
    %8 = vsyncpa [#allocation4], 0
    %9 = vsyncpa [#allocation5], 0
    // Predicated region
    $region2: #{tpu_custom_call.1} parent=1 // pred_check
      _
    $region3: #{tpu_custom_call.1} parent=1 // pred_check_branch
      %11 = sbr.rel (0) target = $region5
    $region4: #{tpu_custom_call.1} parent=1 // pred_region
      %s13 = ssub.s32 256, 256
      %14 = vsyncadd [#allocation4], %s13
      %s15 = sshll.u32 [#allocation3], 4
      %s16 = int_to_ptr.vmem [resolvable:$true] %s15
      %21 = dma.hbm_to_vmem [thread:$0]  %s0, 256, %s16, [#allocation4], 128, 128, 8
    $region5: #{tpu_custom_call.1} parent=1 // pred_fallthru
      _
    // Predicated region
    $region6: #{tpu_custom_call.1} parent=1 // pred_check
      _
    $region7: #{tpu_custom_call.1} parent=1 // pred_check_branch
      %23 = sbr.rel (0) target = $region9
    $region8: #{tpu_custom_call.1} parent=1 // pred_region
      _
    $region9: #{tpu_custom_call.1} parent=1 // pred_fallthru
      _
    // Predicated region
    $region10: #{tpu_custom_call.1} parent=1 // pred_check
      _
    $region11: #{tpu_custom_call.1} parent=1 // pred_check_branch
      %25 = sbr.rel (0) target = $region13
    $region12: #{tpu_custom_call.1} parent=1 // pred_region
      %26 = dma.done [#allocation4], 256
    $region13: #{tpu_custom_call.1} parent=1 // pred_fallthru
      _
    %v27 = vld [vmem:[#allocation3] sm:$0xff]
    %v28 = vld [vmem:[#allocation3 + $0x8] sm:$0xff]
    %v29 = vmul.f32 %v27, %v27
    %v30 = vmul.f32 %v28, %v28
    %vm31 = vcmask 261120
    %v32 = vsel %vm31, %v29, 0.0
    %33 = vadd.xlane.f32.xlu0 %v32
    %v34 = vpop.xlane.xlu0 %33
    %v35 = vsel %vm31, %v30, 0.0
    %36 = vadd.xlane.f32.xlu0 %v35
    %v37 = vpop.xlane.xlu0 %36
    %v38 = vrcp.pop 32.0
    %v39 = vmul.f32 %v34, %v38
    %v40 = vmul.f32 %v37, %v38
    %v41 = vadd.f32 %v39, 1e-06
    %v42 = vadd.f32 %v40, 1e-06
    %v43 = vrsqrt.pop %v41
    %v44 = vrsqrt.pop %v42
    %s45 = sld [smem:[#allocation2]]
    %v46 = vstv %s45
    %v47 = vmul.f32 %v43, %v46
    %v48 = vmul.f32 %v44, %v46
    %v49 = vmul.f32 %v27, %v47
    %v50 = vmul.f32 %v28, %v48
    %51 = vst.msk [vmem:[#allocation6] sm:$0xff] %vm31, %v49
    %52 = vst.msk [vmem:[#allocation6 + $0x8] sm:$0xff] %vm31, %v50
    // Predicated region
    $region14: #{tpu_custom_call.1} parent=1 // pred_check
      _
    $region15: #{tpu_custom_call.1} parent=1 // pred_check_branch
      %54 = sbr.rel (0) target = $region17
    $region16: #{tpu_custom_call.1} parent=1 // pred_region
      %s56 = ssub.s32 256, 256
      %57 = vsyncadd [#allocation5], %s56
      %s58 = sshll.u32 [#allocation6], 4
      %s59 = int_to_ptr.vmem [resolvable:$true] %s58
      %64 = dma.vmem_to_hbm [thread:$0]  %s59, 256, %s2, [#allocation5], 128, 128, 8
    $region17: #{tpu_custom_call.1} parent=1 // pred_fallthru
      _
    // Predicated region
    $region18: #{tpu_custom_call.1} parent=1 // pred_check
      _
    $region19: #{tpu_custom_call.1} parent=1 // pred_check_branch
      %66 = sbr.rel (0) target = $region21
    $region20: #{tpu_custom_call.1} parent=1 // pred_region
      %67 = dma.done [#allocation5], 256
    $region21: #{tpu_custom_call.1} parent=1 // pred_fallthru
      _
    %68 = vsyncpa [#allocation4], 1
    %69 = vsyncpa [#allocation5], 1

</llo_original>
